<compile_context>
chip_gen: v7x
topology: tpu7x:2x2x1
jax: 0.10.0
libtpu: 0.0.40
codegen_flags: <defaults>
</compile_context>

<pallas_src>
import functools

import jax
import jax.numpy as jnp
from jax.experimental import pallas as pl
from jax.experimental.pallas import tpu as pltpu

TEMPERATURE = 0.5


def _ntxent_kernel(z1_ref, z2_ref, out_ref,
                   col_m, col_l, col_pos, acc,
                   *, inv_t, out_scale, block_rows):
    i = pl.program_id(0)
    ni = pl.num_programs(0)

    # ------------------------------ init ---------------------------------
    @pl.when(i == 0)
    def _():
        acc[...] = jnp.zeros_like(acc)
        col_m[...] = jnp.full_like(col_m, -jnp.inf)
        col_l[...] = jnp.zeros_like(col_l)
        col_pos[...] = jnp.zeros_like(col_pos)

    # ------------- scaled similarity tile (MXU, f32 accumulate) -----------
    z1 = z1_ref[...]                     # (t, D)  row tile
    z2 = z2_ref[...]                     # (B, D)  VMEM-resident keys
    # s[m, n] = <z1[m], z2[n]>   (contraction on last dims, no transpose)
    s = jax.lax.dot_general(z1, z2, (((1,), (1,)), ((), ())),
                            preferred_element_type=jnp.float32)
    s = s * jnp.float32(inv_t)           # apply 1/T in f32 (VPU has slack)

    # --------- positive-pair logits live on the diagonal band -------------
    rr = jax.lax.broadcasted_iota(jnp.int32, s.shape, 0)
    cc = jax.lax.broadcasted_iota(jnp.int32, s.shape, 1)
    pos_blk = jnp.where(cc == rr + i * block_rows, s, 0.0)
    row_pos = jnp.sum(pos_blk, axis=1, keepdims=True)            # (t, 1)
    col_pos[...] += jnp.sum(pos_blk, axis=0, keepdims=True)      # (1, B)

    # --------------- ONE shared exponentiation per tile -------------------
    m_tile = jnp.max(s)                  # scalar tile max (FlashAttention-class)
    e = jnp.exp(s - m_tile)              # single EUP pass over the tile

    # ----------------- direction z1 -> z2 (rows, closed form) -------------
    row_sum = jnp.sum(e, axis=1, keepdims=True)                  # (t, 1)
    # positive is counted twice on purpose (matches the PyTorch cat([pos, S])).
    lse_row = m_tile + jnp.log(row_sum + jnp.exp(row_pos - m_tile))
    acc[...] += jnp.sum(lse_row - row_pos)

    # ------------ direction z2 -> z1 (columns, online over i) -------------
    cm = col_m[...]                                              # (1, B)
    cm_new = jnp.maximum(cm, m_tile)
    col_sum = jnp.sum(e, axis=0, keepdims=True)                  # (1, B)
    col_l[...] = (col_l[...] * jnp.exp(cm - cm_new)
                  + col_sum * jnp.exp(m_tile - cm_new))
    col_m[...] = cm_new

    # ------------------ finalize + emit scalar on last step ---------------
    @pl.when(i == ni - 1)
    def _():
        cp = col_pos[...]
        cmf = col_m[...]
        lse_col = cmf + jnp.log(col_l[...] + jnp.exp(cp - cmf))
        total = acc[...] + jnp.sum(lse_col - cp)
        out_ref[...] = total * out_scale


def _pick_block_rows(batch, block_rows=None):
    if block_rows is not None:
        assert batch % block_rows == 0
        assert block_rows == batch or block_rows % 8 == 0
        return block_rows
    # Largest tile that divides the batch; keeps the MXU fed while bounding the
    # (t, B) f32 S/E intermediates.  Small / odd batches use one full tile.
    for t in (256, 128, 64, 32, 16, 8):
        if t <= batch and batch % t == 0:
            return t
    return batch


def _vmem_capacity_bytes():
    try:
        return int(pltpu.get_tpu_info().vmem_capacity_bytes)
    except Exception:
        return 64 * 1024 * 1024      # conservative (v7x per-TC)


def contrastive_learning_loss(z1, z2, temperature=TEMPERATURE, block_rows=None,
                              use_bf16_matmul=False):
    assert z1.ndim == 2 and z1.shape == z2.shape
    if use_bf16_matmul and z1.dtype == jnp.float32:
        # Opt-in: bf16 MXU operands (full rate, half the DMA bytes); all
        # softmax / logsumexp math stays f32 inside the kernel.
        z1 = z1.astype(jnp.bfloat16)
        z2 = z2.astype(jnp.bfloat16)

    batch, dim = z1.shape
    itemsize = jnp.dtype(z1.dtype).itemsize
    t = _pick_block_rows(batch, block_rows)
    n_tiles = batch // t

    # ------------------- VMEM budget (chip-aware) -------------------------
    z2_bytes = batch * dim * itemsize                  # resident keys
    z1_bytes = 2 * t * dim * itemsize                  # double-buffered row tile
    s_bytes = 3 * t * batch * 4                        # S, E, masked temps (f32)
    col_bytes = 3 * 8 * max(batch, 128) * 4 + 4096     # column state + scalar acc
    vmem_needed = z2_bytes + z1_bytes + s_bytes + col_bytes
    vmem_cap = _vmem_capacity_bytes()
    # TODO(synk): switch to the streaming 2-D grid instead of asserting here.
    assert vmem_needed < int(0.75 * vmem_cap), (
        "z2 too large for the VMEM-resident path", vmem_needed, vmem_cap)
    vmem_limit = min(vmem_cap, int(1.5 * vmem_needed) + (4 << 20))

    kernel = functools.partial(_ntxent_kernel,
                               inv_t=1.0 / temperature,
                               out_scale=0.5 / batch,
                               block_rows=t)

    cost = pl.CostEstimate(
        flops=2 * batch * batch * dim,
        transcendentals=batch * batch + 4 * batch,
        bytes_accessed=2 * batch * dim * itemsize + 4,
    )

    out = pl.pallas_call(
        kernel,
        out_shape=jax.ShapeDtypeStruct((1, 1), jnp.float32),
        grid_spec=pltpu.PrefetchScalarGridSpec(
            num_scalar_prefetch=0,
            grid=(n_tiles,),
            in_specs=[
                pl.BlockSpec((t, dim), lambda i: (i, 0)),        # z1 row tile
                pl.BlockSpec((batch, dim), lambda i: (0, 0)),    # z2 resident
            ],
            out_specs=pl.BlockSpec((1, 1), lambda i: (0, 0)),
            scratch_shapes=[
                pltpu.VMEM((1, batch), jnp.float32),   # column running max
                pltpu.VMEM((1, batch), jnp.float32),   # column running sumexp
                pltpu.VMEM((1, batch), jnp.float32),   # column positive logits
                pltpu.VMEM((1, 1), jnp.float32),       # scalar loss accumulator
            ],
        ),
        compiler_params=pltpu.CompilerParams(
            # The single grid axis carries the column accumulators -> sequential.
            dimension_semantics=("arbitrary",),
            vmem_limit_bytes=vmem_limit,
        ),
        cost_estimate=cost,
    )(z1, z2)
    return out[0, 0]


def _reference_loss(z1, z2, temperature=TEMPERATURE):
    """Pure-JAX reference mirroring the PyTorch module, for verification."""
    def one_dir(a, b):
        pos = jnp.einsum("bd,bd->b", a, b)
        neg = jnp.einsum("bd,cd->bc", a, b)
        logits = jnp.concatenate([pos[:, None], neg], axis=1) / temperature
        lse = jax.scipy.special.logsumexp(logits, axis=1)
        return jnp.mean(lse - logits[:, 0])
    return 0.5 * (one_dir(z1, z2) + one_dir(z2, z1))


if __name__ == "__main__":
    key = jax.random.PRNGKey(0)
    k1, k2, k3, k4 = jax.random.split(key, 4)

    # Small embedding-pair batch consistent with the module's forward.
    B, D = 8, 32
    z1 = jax.random.normal(k1, (B, D), dtype=jnp.float32)
    z2 = jax.random.normal(k2, (B, D), dtype=jnp.float32)
    loss = contrastive_learning_loss(z1, z2)
    jax.block_until_ready(loss)
    ref = _reference_loss(z1, z2)
    assert jnp.allclose(loss, ref, atol=1e-4, rtol=1e-4), (loss, ref)

    # Exercise the multi-tile (online column logsumexp) path.
    B2, D2 = 16, 32
    a = jax.random.normal(k3, (B2, D2), dtype=jnp.float32)
    b = jax.random.normal(k4, (B2, D2), dtype=jnp.float32)
    loss2 = contrastive_learning_loss(a, b, block_rows=8)
    jax.block_until_ready(loss2)
    ref2 = _reference_loss(a, b)
    assert jnp.allclose(loss2, ref2, atol=1e-4, rtol=1e-4), (loss2, ref2)

    # Opt-in bf16 MXU path compiles and produces a finite value.
    loss3 = contrastive_learning_loss(a, b, block_rows=8, use_bf16_matmul=True)
    jax.block_until_ready(loss3)
    assert bool(jnp.isfinite(loss3)), loss3

    print("KERNEL_OK")
</pallas_src>

<mosaic_0001>
module attributes {stable_mosaic.version = 11 : i64} {
  func.func @_ntxent_kernel(%arg0: i32, %arg1: memref<8x32xf32, #tpu.memory_space<vmem>>, %arg2: memref<8x32xf32, #tpu.memory_space<vmem>>, %arg3: memref<1x1xf32, #tpu.memory_space<vmem>>, %arg4: memref<1x8xf32, #tpu.memory_space<vmem>>, %arg5: memref<1x8xf32, #tpu.memory_space<vmem>>, %arg6: memref<1x8xf32, #tpu.memory_space<vmem>>, %arg7: memref<1x1xf32, #tpu.memory_space<vmem>>) attributes {dimension_semantics = [#tpu.dimension_semantics<arbitrary>], iteration_bounds = array<i64: 1>, scalar_prefetch = 0 : i64, scratch_operands = 4 : i64, tpu.core_type = #tpu.core_type<tc>, window_params = [{transform_indices = @transform_0, window_bounds = array<i64: 8, 32>}, {pipeline_mode = #tpu.pipeline_mode<synchronous>, transform_indices = @transform_1, window_bounds = array<i64: 8, 32>}, {pipeline_mode = #tpu.pipeline_mode<synchronous>, transform_indices = @transform_2, window_bounds = array<i64: 1, 1>}]} {
    %c0_i32 = arith.constant 0 : i32
    %0 = arith.cmpi eq, %arg0, %c0_i32 : i32
    %1 = arith.extui %0 : i1 to i32
    %c0_i32_0 = arith.constant 0 : i32
    %2 = arith.cmpi ne, %1, %c0_i32_0 : i32
    scf.if %2 {
      %cst_30 = arith.constant 0.000000e+00 : f32
      %67 = vector.broadcast %cst_30 : f32 to vector<1x1xf32>
      %c0_31 = arith.constant 0 : index
      %c0_32 = arith.constant 0 : index
      %68 = vector.load %arg7[%c0_31, %c0_32] : memref<1x1xf32, #tpu.memory_space<vmem>>, vector<1x1xf32>
      tpu.vector_store %arg7[%c0_31, %c0_32], %67 {strides = array<i32>} : memref<1x1xf32, #tpu.memory_space<vmem>>, vector<1x1xf32>,
      %cst_33 = arith.constant 0xFF800000 : f32
      %69 = vector.broadcast %cst_33 : f32 to vector<1x8xf32>
      %c0_34 = arith.constant 0 : index
      %c0_35 = arith.constant 0 : index
      %70 = vector.load %arg4[%c0_34, %c0_35] : memref<1x8xf32, #tpu.memory_space<vmem>>, vector<1x8xf32>
      tpu.vector_store %arg4[%c0_34, %c0_35], %69 {strides = array<i32>} : memref<1x8xf32, #tpu.memory_space<vmem>>, vector<1x8xf32>,
      %cst_36 = arith.constant 0.000000e+00 : f32
      %71 = vector.broadcast %cst_36 : f32 to vector<1x8xf32>
      %c0_37 = arith.constant 0 : index
      %c0_38 = arith.constant 0 : index
      %72 = vector.load %arg5[%c0_37, %c0_38] : memref<1x8xf32, #tpu.memory_space<vmem>>, vector<1x8xf32>
      tpu.vector_store %arg5[%c0_37, %c0_38], %71 {strides = array<i32>} : memref<1x8xf32, #tpu.memory_space<vmem>>, vector<1x8xf32>,
      %cst_39 = arith.constant 0.000000e+00 : f32
      %73 = vector.broadcast %cst_39 : f32 to vector<1x8xf32>
      %c0_40 = arith.constant 0 : index
      %c0_41 = arith.constant 0 : index
      %74 = vector.load %arg6[%c0_40, %c0_41] : memref<1x8xf32, #tpu.memory_space<vmem>>, vector<1x8xf32>
      tpu.vector_store %arg6[%c0_40, %c0_41], %73 {strides = array<i32>} : memref<1x8xf32, #tpu.memory_space<vmem>>, vector<1x8xf32>,
    } else {
    }
    %c0 = arith.constant 0 : index
    %c0_1 = arith.constant 0 : index
    %3 = vector.load %arg1[%c0, %c0_1] : memref<8x32xf32, #tpu.memory_space<vmem>>, vector<8x32xf32>
    %c0_2 = arith.constant 0 : index
    %c0_3 = arith.constant 0 : index
    %4 = vector.load %arg2[%c0_2, %c0_3] : memref<8x32xf32, #tpu.memory_space<vmem>>, vector<8x32xf32>
    %cst = arith.constant dense<0.000000e+00> : vector<8x8xf32>
    %5 = tpu.matmul %3, %4, %cst {dimension_numbers = #tpu.dot_dimension_numbers<[1], [1], [0], [0], [0, 0, 1, 0], [], []>} : vector<8x32xf32>, vector<8x32xf32>, vector<8x8xf32> -> vector<8x8xf32>
    %cst_4 = arith.constant 2.000000e+00 : f32
    %6 = vector.broadcast %cst_4 : f32 to vector<8x8xf32>
    %7 = arith.mulf %5, %6 : vector<8x8xf32>
    %8 = tpu.iota {dimensions = array<i32: 0>} : vector<8x8xi32>
    %9 = tpu.iota {dimensions = array<i32: 1>} : vector<8x8xi32>
    %c8_i32 = arith.constant 8 : i32
    %10 = arith.muli %arg0, %c8_i32 : i32
    %11 = vector.broadcast %10 : i32 to vector<8x8xi32>
    %12 = arith.addi %8, %11 : vector<8x8xi32>
    %13 = arith.cmpi eq, %9, %12 : vector<8x8xi32>
    %cst_5 = arith.constant 0.000000e+00 : f32
    %14 = vector.broadcast %cst_5 : f32 to vector<8x8xf32>
    %15 = arith.select %13, %7, %14 : vector<8x8xi1>, vector<8x8xf32>
    %cst_6 = arith.constant dense<0.000000e+00> : vector<8xf32>
    %16 = vector.multi_reduction <add>, %15, %cst_6 [1] : vector<8x8xf32> to vector<8xf32>
    %17 = vector.shape_cast %16 : vector<8xf32> to vector<8x1xf32>
    %c0_7 = arith.constant 0 : index
    %c0_8 = arith.constant 0 : index
    %18 = vector.load %arg6[%c0_7, %c0_8] : memref<1x8xf32, #tpu.memory_space<vmem>>, vector<1x8xf32>
    %cst_9 = arith.constant dense<0.000000e+00> : vector<8xf32>
    %19 = vector.multi_reduction <add>, %15, %cst_9 [0] : vector<8x8xf32> to vector<8xf32>
    %20 = vector.shape_cast %19 : vector<8xf32> to vector<1x8xf32>
    %21 = arith.addf %18, %20 : vector<1x8xf32>
    %c0_10 = arith.constant 0 : index
    %c0_11 = arith.constant 0 : index
    %22 = vector.load %arg6[%c0_10, %c0_11] : memref<1x8xf32, #tpu.memory_space<vmem>>, vector<1x8xf32>
    tpu.vector_store %arg6[%c0_10, %c0_11], %21 {strides = array<i32>} : memref<1x8xf32, #tpu.memory_space<vmem>>, vector<1x8xf32>,
    %23 = vector.shape_cast %7 : vector<8x8xf32> to vector<1x8x8xf32>
    %cst_12 = arith.constant dense<0xFF800000> : vector<1xf32>
    %24 = vector.multi_reduction <maximumf>, %23, %cst_12 [1, 2] : vector<1x8x8xf32> to vector<1xf32>
    %25 = vector.shape_cast %24 : vector<1xf32> to vector<1x1x1xf32>
    %26 = vector.extract %25[0, 0, 0] : f32 from vector<1x1x1xf32>
    %27 = vector.broadcast %26 : f32 to vector<8x8xf32>
    %28 = arith.subf %7, %27 : vector<8x8xf32>
    %29 = math.exp %28 : vector<8x8xf32>
    %cst_13 = arith.constant dense<0.000000e+00> : vector<8xf32>
    %30 = vector.multi_reduction <add>, %29, %cst_13 [1] : vector<8x8xf32> to vector<8xf32>
    %31 = vector.shape_cast %30 : vector<8xf32> to vector<8x1xf32>
    %32 = vector.broadcast %26 : f32 to vector<8x1xf32>
    %33 = arith.subf %17, %32 : vector<8x1xf32>
    %34 = math.exp %33 : vector<8x1xf32>
    %35 = arith.addf %31, %34 : vector<8x1xf32>
    %36 = math.log %35 : vector<8x1xf32>
    %37 = vector.broadcast %26 : f32 to vector<8x1xf32>
    %38 = arith.addf %37, %36 : vector<8x1xf32>
    %c0_14 = arith.constant 0 : index
    %c0_15 = arith.constant 0 : index
    %39 = vector.load %arg7[%c0_14, %c0_15] : memref<1x1xf32, #tpu.memory_space<vmem>>, vector<1x1xf32>
    %40 = arith.subf %38, %17 : vector<8x1xf32>
    %41 = vector.shape_cast %40 : vector<8x1xf32> to vector<1x8x1xf32>
    %cst_16 = arith.constant dense<0.000000e+00> : vector<1xf32>
    %42 = vector.multi_reduction <add>, %41, %cst_16 [1, 2] : vector<1x8x1xf32> to vector<1xf32>
    %43 = vector.shape_cast %42 : vector<1xf32> to vector<1x1x1xf32>
    %44 = vector.extract %43[0, 0, 0] : f32 from vector<1x1x1xf32>
    %45 = vector.broadcast %44 : f32 to vector<1x1xf32>
    %46 = arith.addf %39, %45 : vector<1x1xf32>
    %c0_17 = arith.constant 0 : index
    %c0_18 = arith.constant 0 : index
    %47 = vector.load %arg7[%c0_17, %c0_18] : memref<1x1xf32, #tpu.memory_space<vmem>>, vector<1x1xf32>
    tpu.vector_store %arg7[%c0_17, %c0_18], %46 {strides = array<i32>} : memref<1x1xf32, #tpu.memory_space<vmem>>, vector<1x1xf32>,
    %c0_19 = arith.constant 0 : index
    %c0_20 = arith.constant 0 : index
    %48 = vector.load %arg4[%c0_19, %c0_20] : memref<1x8xf32, #tpu.memory_space<vmem>>, vector<1x8xf32>
    %49 = vector.broadcast %26 : f32 to vector<1x8xf32>
    %50 = arith.maximumf %48, %49 : vector<1x8xf32>
    %cst_21 = arith.constant dense<0.000000e+00> : vector<8xf32>
    %51 = vector.multi_reduction <add>, %29, %cst_21 [0] : vector<8x8xf32> to vector<8xf32>
    %52 = vector.shape_cast %51 : vector<8xf32> to vector<1x8xf32>
    %c0_22 = arith.constant 0 : index
    %c0_23 = arith.constant 0 : index
    %53 = vector.load %arg5[%c0_22, %c0_23] : memref<1x8xf32, #tpu.memory_space<vmem>>, vector<1x8xf32>
    %54 = arith.subf %48, %50 : vector<1x8xf32>
    %55 = math.exp %54 : vector<1x8xf32>
    %56 = arith.mulf %53, %55 : vector<1x8xf32>
    %57 = vector.broadcast %26 : f32 to vector<1x8xf32>
    %58 = arith.subf %57, %50 : vector<1x8xf32>
    %59 = math.exp %58 : vector<1x8xf32>
    %60 = arith.mulf %52, %59 : vector<1x8xf32>
    %61 = arith.addf %56, %60 : vector<1x8xf32>
    %c0_24 = arith.constant 0 : index
    %c0_25 = arith.constant 0 : index
    %62 = vector.load %arg5[%c0_24, %c0_25] : memref<1x8xf32, #tpu.memory_space<vmem>>, vector<1x8xf32>
    tpu.vector_store %arg5[%c0_24, %c0_25], %61 {strides = array<i32>} : memref<1x8xf32, #tpu.memory_space<vmem>>, vector<1x8xf32>,
    %c0_26 = arith.constant 0 : index
    %c0_27 = arith.constant 0 : index
    %63 = vector.load %arg4[%c0_26, %c0_27] : memref<1x8xf32, #tpu.memory_space<vmem>>, vector<1x8xf32>
    tpu.vector_store %arg4[%c0_26, %c0_27], %50 {strides = array<i32>} : memref<1x8xf32, #tpu.memory_space<vmem>>, vector<1x8xf32>,
    %c0_i32_28 = arith.constant 0 : i32
    %64 = arith.cmpi eq, %arg0, %c0_i32_28 : i32
    %65 = arith.extui %64 : i1 to i32
    %c0_i32_29 = arith.constant 0 : i32
    %66 = arith.cmpi ne, %65, %c0_i32_29 : i32
    scf.if %66 {
      %c0_30 = arith.constant 0 : index
      %c0_31 = arith.constant 0 : index
      %67 = vector.load %arg6[%c0_30, %c0_31] : memref<1x8xf32, #tpu.memory_space<vmem>>, vector<1x8xf32>
      %c0_32 = arith.constant 0 : index
      %c0_33 = arith.constant 0 : index
      %68 = vector.load %arg4[%c0_32, %c0_33] : memref<1x8xf32, #tpu.memory_space<vmem>>, vector<1x8xf32>
      %c0_34 = arith.constant 0 : index
      %c0_35 = arith.constant 0 : index
      %69 = vector.load %arg5[%c0_34, %c0_35] : memref<1x8xf32, #tpu.memory_space<vmem>>, vector<1x8xf32>
      %70 = arith.subf %67, %68 : vector<1x8xf32>
      %71 = math.exp %70 : vector<1x8xf32>
      %72 = arith.addf %69, %71 : vector<1x8xf32>
      %73 = math.log %72 : vector<1x8xf32>
      %74 = arith.addf %68, %73 : vector<1x8xf32>
      %c0_36 = arith.constant 0 : index
      %c0_37 = arith.constant 0 : index
      %75 = vector.load %arg7[%c0_36, %c0_37] : memref<1x1xf32, #tpu.memory_space<vmem>>, vector<1x1xf32>
      %76 = arith.subf %74, %67 : vector<1x8xf32>
      %77 = vector.shape_cast %76 : vector<1x8xf32> to vector<1x1x8xf32>
      %cst_38 = arith.constant dense<0.000000e+00> : vector<1xf32>
      %78 = vector.multi_reduction <add>, %77, %cst_38 [1, 2] : vector<1x1x8xf32> to vector<1xf32>
      %79 = vector.shape_cast %78 : vector<1xf32> to vector<1x1x1xf32>
      %80 = vector.extract %79[0, 0, 0] : f32 from vector<1x1x1xf32>
      %81 = vector.broadcast %80 : f32 to vector<1x1xf32>
      %82 = arith.addf %75, %81 : vector<1x1xf32>
      %cst_39 = arith.constant 6.250000e-02 : f32
      %83 = vector.broadcast %cst_39 : f32 to vector<1x1xf32>
      %84 = arith.mulf %82, %83 : vector<1x1xf32>
      %c0_40 = arith.constant 0 : index
      %c0_41 = arith.constant 0 : index
      %85 = vector.load %arg3[%c0_40, %c0_41] : memref<1x1xf32, #tpu.memory_space<vmem>>, vector<1x1xf32>
      tpu.vector_store %arg3[%c0_40, %c0_41], %84 {strides = array<i32>} : memref<1x1xf32, #tpu.memory_space<vmem>>, vector<1x1xf32>,
    } else {
    }
    return
  }
  func.func @transform_0(%arg0: i32) -> (i32, i32) {
    %c0_i32 = arith.constant 0 : i32
    %c0_i32_0 = arith.constant 0 : i32
    return %arg0, %c0_i32 : i32, i32
  }
  func.func @transform_1(%arg0: i32) -> (i32, i32) {
    %c0_i32 = arith.constant 0 : i32
    %c0_i32_0 = arith.constant 0 : i32
    %c0_i32_1 = arith.constant 0 : i32
    return %c0_i32, %c0_i32_0 : i32, i32
  }
  func.func @transform_2(%arg0: i32) -> (i32, i32) {
    %c0_i32 = arith.constant 0 : i32
    %c0_i32_0 = arith.constant 0 : i32
    %c0_i32_1 = arith.constant 0 : i32
    return %c0_i32, %c0_i32_0 : i32, i32
  }
}

</mosaic_0001>

<llo_original>
// kernel: tpu_custom_call.1
$region0: #{tpu_custom_call.1}
  #allocation0 [shape = 'u32[]', space=smem, size = 0x4, offset = 0x4, fixed_abs, tag = 'smem constant byte address 0x4 - core index']
  #allocation1 [shape = 'u32[144,128]{1,0:T(1,128)}', space=vmem, size = 0x12000, scoped, tag = 'internal scratch']
  #allocation2 [shape = 'f32[1,8]{1,0:T(1,128)}', space=vmem, size = 0x200, scoped, tag = 'scratch operand']
  #allocation3 [shape = 'f32[1,8]{1,0:T(1,128)}', space=vmem, size = 0x200, scoped, tag = 'scratch operand']
  #allocation4 [shape = 'f32[1,8]{1,0:T(1,128)}', space=vmem, size = 0x200, scoped, tag = 'scratch operand']
  #allocation5 [shape = 'f32[1,1]{1,0:T(1,128)}', space=vmem, size = 0x200, scoped, tag = 'scratch operand']
  %s0 = inlined_call_operand.hbm [shape: f32[8,32], index: 0, kind: input, shape index: {}]
  %s1 = inlined_call_operand.hbm [shape: f32[8,32], index: 1, kind: input, shape index: {}]
  %s2 = inlined_call_operand.hbm [shape: f32[1,1], index: 2, kind: output, shape index: {}]
  %s3 = sld [smem:[#allocation0]]
  $region34: #{tpu_custom_call.1} parent=0
    _
  %s5 = ssub.s32 1, %s3
  %s6 = scalar_select 0, %s5, %s3
  $region1: #{tpu_custom_call.1} parent=0
    #allocation6 [shape = 'u8[4096]{0}', space=vmem, size = 0x1000, scoped, tag = 'input window, operand 0, single buffered']
    #allocation7 [shape = 's32[1]{0}', space=sflag, size = 0x4, scoped, tag = 'scoped memory for tpu_custom_call.1']
    #allocation8 [shape = 's32[1]{0}', space=sflag, size = 0x4, scoped, tag = 'scoped memory for tpu_custom_call.1']
    #allocation9 [shape = 'u8[4096]{0}', space=vmem, size = 0x1000, scoped, tag = 'input window, operand 1, single buffered']
    #allocation10 [shape = 's32[1]{0}', space=sflag, size = 0x4, scoped, tag = 'scoped memory for tpu_custom_call.1']
    #allocation11 [shape = 'u8[512]{0}', space=vmem, size = 0x400, scoped, tag = 'output window, operand 0, single buffered']
    %7 = vsyncpa [#allocation7], 0
    %8 = vsyncpa [#allocation10], 0
    %9 = vsyncpa [#allocation8], 0
    // Predicated region
    $region2: #{tpu_custom_call.1} parent=1 // pred_check
      _
    $region3: #{tpu_custom_call.1} parent=1 // pred_check_branch
      %11 = sbr.rel (0) target = $region5
    $region4: #{tpu_custom_call.1} parent=1 // pred_region
      %s13 = ssub.s32 128, 128
      %14 = vsyncadd [#allocation7], %s13
      %s16 = sshll.u32 [#allocation6], 4
      %s17 = int_to_ptr.vmem [resolvable:$true] %s16
      %19 = dma.hbm_to_vmem [thread:$0]  %s0, 128, %s17, [#allocation7]
    $region5: #{tpu_custom_call.1} parent=1 // pred_fallthru
      _
    // Predicated region
    $region6: #{tpu_custom_call.1} parent=1 // pred_check
      _
    $region7: #{tpu_custom_call.1} parent=1 // pred_check_branch
      %21 = sbr.rel (0) target = $region9
    $region8: #{tpu_custom_call.1} parent=1 // pred_region
      %s23 = ssub.s32 128, 128
      %24 = vsyncadd [#allocation10], %s23
      %s26 = sshll.u32 [#allocation9], 4
      %s27 = int_to_ptr.vmem [resolvable:$true] %s26
      %29 = dma.hbm_to_vmem [thread:$0]  %s1, 128, %s27, [#allocation10]
    $region9: #{tpu_custom_call.1} parent=1 // pred_fallthru
      _
    // Predicated region
    $region10: #{tpu_custom_call.1} parent=1 // pred_check
      _
    $region11: #{tpu_custom_call.1} parent=1 // pred_check_branch
      %31 = sbr.rel (0) target = $region13
    $region12: #{tpu_custom_call.1} parent=1 // pred_region
      %32 = dma.done [#allocation7], 128
    $region13: #{tpu_custom_call.1} parent=1 // pred_fallthru
      _
    // Predicated region
    $region14: #{tpu_custom_call.1} parent=1 // pred_check
      _
    $region15: #{tpu_custom_call.1} parent=1 // pred_check_branch
      %34 = sbr.rel (0) target = $region17
    $region16: #{tpu_custom_call.1} parent=1 // pred_region
      %35 = dma.done [#allocation10], 128
    $region17: #{tpu_custom_call.1} parent=1 // pred_fallthru
      _
    %p36 = scmp.eq.s32.totalorder 0, 0
    // Predicated region
    $region18: #{tpu_custom_call.1} parent=1 // pred_check
      %p37 = pneg %p36
    $region19: #{tpu_custom_call.1} parent=1 // pred_check_branch
      %39 = sbr.rel (%p37) target = $region21
    $region20: #{tpu_custom_call.1} parent=1 // pred_region
      %vm40 = vcmask 0
      %41 = vst.msk [vmem:[#allocation5] sm:$0x1] %vm40, 0.0
      %vm42 = vcmask 57344
      %43 = vst.msk [vmem:[#allocation2] sm:$0x1] %vm42, -inf
      %44 = vst.msk [vmem:[#allocation3] sm:$0x1] %vm42, 0.0
      %45 = vst.msk [vmem:[#allocation4] sm:$0x1] %vm42, 0.0
    $region21: #{tpu_custom_call.1} parent=1 // pred_fallthru
      _
    %v46 = vld [vmem:[#allocation6] sm:$0xff]
    %v47 = vld [vmem:[#allocation9] sm:$0xff]
    %vm48 = vcmask 261120
    %v50 = vsel %vm48, %v46, 0
    %v53 = vsel %vm48, %v47, 0
    %55 = vmatprep.subr.mxu0 0.0
    %56 = vmatpush1.xpose.msra.mxu0 %v53
    %57 = vmatprep.subr.mxu0 0.0
    %58 = vmatpush1.xpose.msra.mxu0 0.0
    %59 = vmatprep.subr.mxu0 0.0
    %60 = vmatpush1.xpose.msra.mxu0 0.0
    %61 = vmatprep.subr.mxu0 0.0
    %62 = vmatpush1.xpose.msra.mxu0 0.0
    %63 = vmatprep.subr.mxu0 0.0
    %64 = vmatpush1.xpose.msra.mxu0 0.0
    %65 = vmatprep.subr.mxu0 0.0
    %66 = vmatpush1.xpose.msra.mxu0 0.0
    %67 = vmatprep.subr.mxu0 0.0
    %68 = vmatpush1.xpose.msra.mxu0 0.0
    %69 = vmatprep.subr.mxu0 0.0
    %70 = vmatpush1.xpose.msra.mxu0 0.0
    %71 = vmatprep.subr.mxu0 0.0
    %72 = vmatpush1.xpose.msra.mxu0 0.0
    %73 = vmatprep.subr.mxu0 0.0
    %74 = vmatpush1.xpose.msra.mxu0 0.0
    %75 = vmatprep.subr.mxu0 0.0
    %76 = vmatpush1.xpose.msra.mxu0 0.0
    %77 = vmatprep.subr.mxu0 0.0
    %78 = vmatpush1.xpose.msra.mxu0 0.0
    %79 = vmatprep.subr.mxu0 0.0
    %80 = vmatpush1.xpose.msra.mxu0 0.0
    %81 = vmatprep.subr.mxu0 0.0
    %82 = vmatpush1.xpose.msra.mxu0 0.0
    %83 = vmatprep.subr.mxu0 0.0
    %84 = vmatpush1.xpose.msra.mxu0 0.0
    %85 = vmatprep.subr.mxu0 0.0
    %86 = vmatpush1.xpose.msra.mxu0 0.0
    %87 = vmatprep.subr.mxu0 0.0
    %88 = vmatpush1.xpose.msra.mxu0 0.0
    %89 = vmatprep.subr.mxu0 0.0
    %90 = vmatpush1.xpose.msra.mxu0 0.0
    %91 = vmatprep.subr.mxu0 0.0
    %92 = vmatpush1.xpose.msra.mxu0 0.0
    %93 = vmatprep.subr.mxu0 0.0
    %94 = vmatpush1.xpose.msra.mxu0 0.0
    %95 = vmatprep.subr.mxu0 0.0
    %96 = vmatpush1.xpose.msra.mxu0 0.0
    %97 = vmatprep.subr.mxu0 0.0
    %98 = vmatpush1.xpose.msra.mxu0 0.0
    %99 = vmatprep.subr.mxu0 0.0
    %100 = vmatpush1.xpose.msra.mxu0 0.0
    %101 = vmatprep.subr.mxu0 0.0
    %102 = vmatpush1.xpose.msra.mxu0 0.0
    %103 = vmatprep.subr.mxu0 0.0
    %104 = vmatpush1.xpose.msra.mxu0 0.0
    %105 = vmatprep.subr.mxu0 0.0
    %106 = vmatpush1.xpose.msra.mxu0 0.0
    %107 = vmatprep.subr.mxu0 0.0
    %108 = vmatpush1.xpose.msra.mxu0 0.0
    %109 = vmatprep.subr.mxu0 0.0
    %110 = vmatpush1.xpose.msra.mxu0 0.0
    %111 = vmatprep.subr.mxu0 0.0
    %112 = vmatpush1.xpose.msra.mxu0 0.0
    %113 = vmatprep.subr.mxu0 0.0
    %114 = vmatpush1.xpose.msra.mxu0 0.0
    %115 = vmatprep.subr.mxu0 0.0
    %116 = vmatpush1.xpose.msra.mxu0 0.0
    %117 = vmatprep.subr.mxu0 0.0
    %118 = vmatpush1.xpose.msra.mxu0 0.0
    %119 = vmatprep.mubr.f32.mxu0 0.0
    %120 = vmatmul.mubr.f32.gmra.mrb[0].mxu0 %v50
    %v121 = vpop.f32.mrb[0].mxu0
    %v122 = vadd.f32 0.0, %v121
    %v123 = vpop.f32.mrb[0].mxu0
    %124 = vdwg.mxu0
    %v125 = vmul.f32 %v122, 2.0
    %v126 = vlaneseq
    %v127 = vshrl.u32 %v126, 7
    %v128 = vlaneseq
    %v129 = vand.u32 %v128, 127
    %s130 = smul.u32 0, 8
    %v131 = vstv %s130
    %v132 = vadd.s32 %v127, %v131
    %vm133 = vcmp.eq.s32.totalorder %v129, %v132
    %v134 = vsel %vm133, %v125, 0.0
    %vm135 = vcmask 64512
    %v136 = vsel %vm135, %v134, 0.0
    %137 = vadd.xlane.f32.xlu0 %v136
    %v138 = vpop.xlane.xlu0 %137
    %v139 = vld [vmem:[#allocation4] sm:$0x1]
    %v140 = vrot.slane %v136, 4
    %v141 = vadd.f32 %v136, %v140
    %v142 = vrot.slane %v141, 2
    %v143 = vadd.f32 %v141, %v142
    %v144 = vrot.slane %v143, 1
    %v145 = vadd.f32 %v143, %v144
    %v146 = vadd.f32 %v139, %v145
    %vm147 = vcmask 57344
    %148 = vst.msk [vmem:[#allocation4] sm:$0x1] %vm147, %v146
    %v149 = vsel %vm135, %v125, -inf
    %150 = vmax.xlane.f32.xlu0 %v149
    %v151 = vpop.xlane.xlu0 %150
    %v152 = vrot.slane %v151, 4
    %v153 = vmax.f32 %v151, %v152
    %v154 = vrot.slane %v153, 2
    %v155 = vmax.f32 %v153, %v154
    %v156 = vrot.slane %v155, 1
    %v157 = vmax.f32 %v155, %v156
    %s158 = vtos %v157
    %v159 = vstv %s158
    %v160 = vsub.f32 %v125, %v159
    %v161 = vmul.f32 %v160, 1.442695
    %v162 = vpow.pop %v161
    %v163 = vsel %vm135, %v162, 0.0
    %164 = vadd.xlane.f32.xlu0 %v163
    %v165 = vpop.xlane.xlu0 %164
    %v166 = vsub.f32 %v138, %v159
    %v167 = vmul.f32 %v166, 1.442695
    %v168 = vpow.pop %v167
    %v169 = vadd.f32 %v165, %v168
    %v170 = vlog2.pop %v169
    %v171 = vmul.f32 %v170, 0.6931472
    %v172 = vadd.f32 %v159, %v171
    %v173 = vld [vmem:[#allocation5] sm:$0x1]
    %v174 = vsub.f32 %v172, %v138
    %vm175 = vcmask 7168
    %v176 = vsel %vm175, %v174, 0.0
    %177 = vadd.xlane.f32.xlu0 %v176
    %v178 = vpop.xlane.xlu0 %177
    %v179 = vrot.slane %v178, 4
    %v180 = vadd.f32 %v178, %v179
    %v181 = vrot.slane %v180, 2
    %v182 = vadd.f32 %v180, %v181
    %v183 = vrot.slane %v182, 1
    %v184 = vadd.f32 %v182, %v183
    %s185 = vtos %v184
    %v186 = vstv %s185
    %v187 = vadd.f32 %v173, %v186
    %vm188 = vcmask 0
    %189 = vst.msk [vmem:[#allocation5] sm:$0x1] %vm188, %v187
    %v190 = vld [vmem:[#allocation2] sm:$0x1]
    %v191 = vmax.f32 %v190, %v159
    %v192 = vrot.slane %v163, 4
    %v193 = vadd.f32 %v163, %v192
    %v194 = vrot.slane %v193, 2
    %v195 = vadd.f32 %v193, %v194
    %v196 = vrot.slane %v195, 1
    %v197 = vadd.f32 %v195, %v196
    %v198 = vld [vmem:[#allocation3] sm:$0x1]
    %v199 = vsub.f32 %v190, %v191
    %v200 = vmul.f32 %v199, 1.442695
    %v201 = vpow.pop %v200
    %v202 = vmul.f32 %v198, %v201
    %v203 = vsub.f32 %v159, %v191
    %v204 = vmul.f32 %v203, 1.442695
    %v205 = vpow.pop %v204
    %v206 = vmul.f32 %v197, %v205
    %v207 = vadd.f32 %v202, %v206
    %208 = vst.msk [vmem:[#allocation3] sm:$0x1] %vm147, %v207
    %209 = vst.msk [vmem:[#allocation2] sm:$0x1] %vm147, %v191
    // Predicated region
    $region22: #{tpu_custom_call.1} parent=1 // pred_check
      %p210 = pneg %p36
    $region23: #{tpu_custom_call.1} parent=1 // pred_check_branch
      %212 = sbr.rel (%p210) target = $region25
    $region24: #{tpu_custom_call.1} parent=1 // pred_region
      %v213 = vld [vmem:[#allocation4] sm:$0x1]
      %v214 = vld [vmem:[#allocation2] sm:$0x1]
      %v215 = vld [vmem:[#allocation3] sm:$0x1]
      %v216 = vsub.f32 %v213, %v214
      %v217 = vmul.f32 %v216, 1.442695
      %v218 = vpow.pop %v217
      %v219 = vadd.f32 %v215, %v218
      %v220 = vlog2.pop %v219
      %v221 = vmul.f32 %v220, 0.6931472
      %v222 = vadd.f32 %v214, %v221
      %v223 = vld [vmem:[#allocation5] sm:$0x1]
      %v224 = vsub.f32 %v222, %v213
      %v225 = vsel %vm147, %v224, 0.0
      %226 = vadd.xlane.f32.xlu0 %v225
      %v227 = vpop.xlane.xlu0 %226
      %v228 = vrot.slane %v227, 4
      %v229 = vadd.f32 %v227, %v228
      %v230 = vrot.slane %v229, 2
      %v231 = vadd.f32 %v229, %v230
      %v232 = vrot.slane %v231, 1
      %v233 = vadd.f32 %v231, %v232
      %s234 = vtos %v233
      %v235 = vstv %s234
      %v236 = vadd.f32 %v223, %v235
      %v237 = vmul.f32 %v236, 0.0625
      %238 = vst.msk [vmem:[#allocation11] sm:$0x1] %vm188, %v237
    $region25: #{tpu_custom_call.1} parent=1 // pred_fallthru
      _
    // Predicated region
    $region26: #{tpu_custom_call.1} parent=1 // pred_check
      _
    $region27: #{tpu_custom_call.1} parent=1 // pred_check_branch
      %240 = sbr.rel (0) target = $region29
    $region28: #{tpu_custom_call.1} parent=1 // pred_region
      %s242 = ssub.s32 16, 16
      %243 = vsyncadd [#allocation8], %s242
      %s245 = sshll.u32 [#allocation11], 4
      %s246 = int_to_ptr.vmem [resolvable:$true] %s245
      %248 = dma.vmem_to_hbm [thread:$0]  %s246, 16, %s2, [#allocation8]
    $region29: #{tpu_custom_call.1} parent=1 // pred_fallthru
      _
    // Predicated region
    $region30: #{tpu_custom_call.1} parent=1 // pred_check
      _
    $region31: #{tpu_custom_call.1} parent=1 // pred_check_branch
      %250 = sbr.rel (0) target = $region33
    $region32: #{tpu_custom_call.1} parent=1 // pred_region
      %251 = dma.done [#allocation8], 16
    $region33: #{tpu_custom_call.1} parent=1 // pred_fallthru
      _
    %252 = vsyncpa [#allocation7], 1
    %253 = vsyncpa [#allocation10], 1
    %254 = vsyncpa [#allocation8], 1

</llo_original>
